<compile_context>
chip_gen: v5e
topology: v5e:2x2
jax: 0.10.0
libtpu: 0.0.40
codegen_flags: <defaults>
</compile_context>

<pallas_src>
import functools
import math

import jax
import jax.numpy as jnp
from jax.experimental import pallas as pl
from jax.experimental.pallas import tpu as pltpu


def _cdiv(a: int, b: int) -> int:
    return -(-a // b)


def _sublane_pack(dtype) -> int:
    # second-minor packing: 8 rows for 32-bit, 16 for 16-bit, 32 for 8-bit
    itemsize = max(1, jnp.dtype(dtype).itemsize)
    return max(8, 32 // itemsize)


def _tpu_params() -> tuple[int, int]:
    """Returns (per-TensorCore VMEM bytes, TensorCores per chip), defensively."""
    vmem_cap = 64 * 1024 * 1024          # conservative fallback (v7x per-TC)
    num_cores = 1
    try:
        info = pltpu.get_tpu_info()
        vmem_cap = int(getattr(info, "vmem_capacity_bytes", vmem_cap) or vmem_cap)
        for attr in ("num_cores", "tensor_cores_per_chip", "cores_per_chip",
                     "num_tensorcores"):
            v = getattr(info, attr, None)
            if v:
                num_cores = int(v)
                break
    except Exception:
        return vmem_cap, num_cores
    # On multi-TC chips (v7x) never size blocks against a chip-level figure:
    # the per-TensorCore VMEM is 64 MiB.
    if num_cores > 1:
        vmem_cap = min(vmem_cap, 64 * 1024 * 1024)
    return max(vmem_cap, 16 * 1024 * 1024), max(num_cores, 1)


# ----------------------------------------------------------------------------
# Kernels
# ----------------------------------------------------------------------------
def _softmax_rows_kernel(x_ref, o_ref, *, scale):
    # (row_tile, D) block; numerically-stable softmax along the lane axis.
    x = x_ref[...].astype(jnp.float32) * scale
    m = jnp.max(x, axis=-1, keepdims=True)       # XLU cross-lane reduce
    e = jnp.exp(x - m)                           # EUP
    s = jnp.sum(e, axis=-1, keepdims=True)       # XLU cross-lane reduce
    # Exact divide (not approx reciprocal) for parity with torch.softmax.
    o_ref[...] = (e / s).astype(o_ref.dtype)


def _softmax_cols_kernel(x_ref, o_ref, *, scale):
    # Lane-dense path for small / unaligned D: block is (D, col_tile), the
    # softmax axis is the sublane axis, and the stored last dim is lane-dense.
    x = x_ref[...].astype(jnp.float32) * scale
    m = jnp.max(x, axis=0, keepdims=True)        # cross-sublane reduce
    e = jnp.exp(x - m)
    s = jnp.sum(e, axis=0, keepdims=True)
    o_ref[...] = (e / s).astype(o_ref.dtype)


# ----------------------------------------------------------------------------
# Tile sizing heuristics
# ----------------------------------------------------------------------------
def _megacore_split(tile: int, total_padded: int, unit: int,
                    num_cores: int, total: int) -> int:
    """On multi-TC chips aim for >=2 grid steps per core (best effort)."""
    if num_cores <= 1:
        return tile
    min_steps = 2 * num_cores
    if total_padded < min_steps * unit:
        return tile
    steps = _cdiv(total, tile)
    if steps < min_steps or steps % num_cores != 0:
        steps = _cdiv(max(steps, min_steps), num_cores) * num_cores
        tile = max(unit, (_cdiv(total_padded, steps) // unit) * unit)
    return tile


def _pick_row_tile(R: int, D: int, dtype, vmem_budget: int, num_cores: int) -> int:
    pack = _sublane_pack(dtype)
    io = jnp.dtype(dtype).itemsize
    # per-row VMEM cost: double-buffered in + out blocks, plus ~4 live f32
    # block temporaries (x*scale, x-m, exp, exp/sum).
    bytes_per_row = D * (2 * io + 2 * io + 4 * 4)
    max_rows = max(pack, vmem_budget // max(bytes_per_row, 1))
    # Multi-MiB input-block target so per-step overhead (~0.35us) stays small
    # even at v7x's 3.2 TB/s HBM; smaller target on single-TC (v5e/v6e) chips.
    target_bytes = (6 if num_cores > 1 else 3) * 1024 * 1024
    target_rows = max(pack, target_bytes // max(D * io, 1))
    row_tile = min(max_rows, target_rows)
    row_tile = max(pack, (row_tile // pack) * pack)
    rows_padded = _cdiv(R, pack) * pack
    row_tile = min(row_tile, rows_padded)
    return _megacore_split(row_tile, rows_padded, pack, num_cores, R)


def _pick_col_tile(R: int, D: int, dtype, vmem_budget: int, num_cores: int) -> int:
    lane = 128
    if R <= lane:
        return R                     # single block; block dim == full array dim
    io = jnp.dtype(dtype).itemsize
    bytes_per_col = D * (2 * io + 2 * io + 4 * 4)
    max_cols = max(lane, (vmem_budget // max(bytes_per_col, 1)) // lane * lane)
    target_bytes = (6 if num_cores > 1 else 3) * 1024 * 1024
    target_cols = max(lane, (target_bytes // max(D * io, 1)) // lane * lane)
    col_tile = min(max_cols, target_cols)
    cols_padded = _cdiv(R, lane) * lane
    col_tile = min(col_tile, cols_padded)
    return _megacore_split(col_tile, cols_padded, lane, num_cores, R)


# ----------------------------------------------------------------------------
# Wrapper
# ----------------------------------------------------------------------------
def scaled_softmax(x: jax.Array, scale: float) -> jax.Array:
    """Numerically-stable softmax(scale * x, axis=-1) via a Pallas TPU kernel."""
    orig_shape = x.shape
    D = orig_shape[-1]
    R = math.prod(orig_shape[:-1]) if len(orig_shape) > 1 else 1
    x2 = x.reshape(R, D)

    vmem_cap, num_cores = _tpu_params()
    vmem_budget = int(vmem_cap * 0.5)            # headroom for compiler scratch
    vmem_limit = max(32 * 1024 * 1024, int(vmem_cap * 0.85))
    params = pltpu.CompilerParams(
        dimension_semantics=("parallel",), vmem_limit_bytes=vmem_limit)

    # Route small / non-128-multiple D to the lane-dense transposed layout so
    # the output last dim presented to out_specs is lane-dense (no masked
    # partial stores).  Large unaligned D stays row-major (tail-slab masking
    # is a small relative cost there).
    use_transposed = (D % 128 != 0) and (D <= 512)

    if use_transposed:
        xt = x2.T                                # (D, R) — layout plumbing only
        col_tile = _pick_col_tile(R, D, x.dtype, vmem_budget, num_cores)
        grid = (_cdiv(R, col_tile),)
        out_t = pl.pallas_call(
            functools.partial(_softmax_cols_kernel, scale=float(scale)),
            out_shape=jax.ShapeDtypeStruct((D, R), x.dtype),
            grid_spec=pltpu.PrefetchScalarGridSpec(
                num_scalar_prefetch=0,
                grid=grid,
                in_specs=[pl.BlockSpec((D, col_tile), lambda i: (0, i))],
                out_specs=pl.BlockSpec((D, col_tile), lambda i: (0, i)),
            ),
            compiler_params=params,
        )(xt)
        out2 = out_t.T
    else:
        # TODO(synk): for very large D (block > VMEM budget even at the minimal
        # row tile), add a second "arbitrary" grid axis over D with running
        # max/sum VMEM scratch (online softmax) instead of shrinking row_tile.
        row_tile = _pick_row_tile(R, D, x.dtype, vmem_budget, num_cores)
        grid = (_cdiv(R, row_tile),)
        out2 = pl.pallas_call(
            functools.partial(_softmax_rows_kernel, scale=float(scale)),
            out_shape=jax.ShapeDtypeStruct((R, D), x.dtype),
            grid_spec=pltpu.PrefetchScalarGridSpec(
                num_scalar_prefetch=0,
                grid=grid,
                in_specs=[pl.BlockSpec((row_tile, D), lambda i: (i, 0))],
                out_specs=pl.BlockSpec((row_tile, D), lambda i: (i, 0)),
            ),
            compiler_params=params,
        )(x2)

    return out2.reshape(orig_shape)


if __name__ == "__main__":
    # ScaledSoftmax(scale) has no learned parameters; just pick a scale.
    scale = 0.5
    key = jax.random.PRNGKey(0)

    # Shape consistent with the forward: (batch=2, seq=8, hidden=32).
    # D=32 exercises the lane-dense transposed path.
    x_small = jax.random.normal(key, (2, 8, 32), dtype=jnp.float32)
    y_small = jax.block_until_ready(scaled_softmax(x_small, scale))
    ref_small = jax.nn.softmax(scale * x_small, axis=-1)
    assert jnp.allclose(y_small, ref_small, atol=1e-5, rtol=1e-5), "small-D mismatch"
    assert jnp.allclose(jnp.sum(y_small, axis=-1), 1.0, atol=1e-5), "rows do not sum to 1"

    # Second shape exercises the lane-dense (D % 128 == 0) row-major path.
    x_big = jax.random.normal(jax.random.PRNGKey(1), (4, 8, 128), dtype=jnp.float32)
    y_big = jax.block_until_ready(scaled_softmax(x_big, scale))
    ref_big = jax.nn.softmax(scale * x_big, axis=-1)
    assert jnp.allclose(y_big, ref_big, atol=1e-5, rtol=1e-5), "aligned-D mismatch"
    assert jnp.allclose(jnp.sum(y_big, axis=-1), 1.0, atol=1e-5), "rows do not sum to 1"

    print("KERNEL_OK")
</pallas_src>

<mosaic_0001>
module attributes {stable_mosaic.version = 11 : i64} {
  func.func @_softmax_cols_kernel(%arg0: i32, %arg1: memref<32x16xf32, #tpu.memory_space<vmem>>, %arg2: memref<32x16xf32, #tpu.memory_space<vmem>>) attributes {dimension_semantics = [#tpu.dimension_semantics<parallel>], iteration_bounds = array<i64: 1>, scalar_prefetch = 0 : i64, scratch_operands = 0 : i64, tpu.core_type = #tpu.core_type<tc>, window_params = [{transform_indices = @transform_0, window_bounds = array<i64: 32, 16>}, {transform_indices = @transform_1, window_bounds = array<i64: 32, 16>}]} {
    %c0 = arith.constant 0 : index
    %c0_0 = arith.constant 0 : index
    %0 = vector.load %arg1[%c0, %c0_0] : memref<32x16xf32, #tpu.memory_space<vmem>>, vector<32x16xf32>
    %cst = arith.constant 5.000000e-01 : f32
    %1 = vector.broadcast %cst : f32 to vector<32x16xf32>
    %2 = arith.mulf %0, %1 : vector<32x16xf32>
    %cst_1 = arith.constant dense<0xFF800000> : vector<16xf32>
    %3 = vector.multi_reduction <maximumf>, %2, %cst_1 [0] : vector<32x16xf32> to vector<16xf32>
    %4 = vector.shape_cast %3 : vector<16xf32> to vector<1x16xf32>
    %5 = vector.broadcast %4 : vector<1x16xf32> to vector<32x16xf32>
    %6 = arith.subf %2, %5 : vector<32x16xf32>
    %7 = math.exp %6 : vector<32x16xf32>
    %cst_2 = arith.constant dense<0.000000e+00> : vector<16xf32>
    %8 = vector.multi_reduction <add>, %7, %cst_2 [0] : vector<32x16xf32> to vector<16xf32>
    %9 = vector.shape_cast %8 : vector<16xf32> to vector<1x16xf32>
    %10 = vector.broadcast %9 : vector<1x16xf32> to vector<32x16xf32>
    %11 = arith.divf %7, %10 : vector<32x16xf32>
    %c0_3 = arith.constant 0 : index
    %c0_4 = arith.constant 0 : index
    %12 = vector.load %arg2[%c0_3, %c0_4] : memref<32x16xf32, #tpu.memory_space<vmem>>, vector<32x16xf32>
    tpu.vector_store %arg2[%c0_3, %c0_4], %11 {strides = array<i32>} : memref<32x16xf32, #tpu.memory_space<vmem>>, vector<32x16xf32>,
    return
  }
  func.func @transform_0(%arg0: i32) -> (i32, i32) {
    %c0_i32 = arith.constant 0 : i32
    %c0_i32_0 = arith.constant 0 : i32
    return %c0_i32, %arg0 : i32, i32
  }
  func.func @transform_1(%arg0: i32) -> (i32, i32) {
    %c0_i32 = arith.constant 0 : i32
    %c0_i32_0 = arith.constant 0 : i32
    return %c0_i32, %arg0 : i32, i32
  }
}

</mosaic_0001>

<llo_original>
// kernel: tpu_custom_call.1
$region0: #{tpu_custom_call.1}
  #allocation0 [shape = 'u32[]', space=smem, size = 0x4, offset = 0x4, fixed_abs, tag = 'smem constant byte address 0x4 - core index']
  #allocation1 [shape = 'u32[72,128]{1,0:T(1,128)}', space=vmem, size = 0x9000, scoped, tag = 'internal scratch']
  %s0 = inlined_call_operand.vmem [shape: f32[32,16], index: 0, kind: input, shape index: {}]
  %s1 = inlined_call_operand.vmem [shape: f32[32,16], index: 1, kind: output, shape index: {}]
  %s2 = sld [smem:[#allocation0]]
  $region14: #{tpu_custom_call.1} parent=0
    _
  %s4 = ssub.s32 1, %s2
  %s5 = scalar_select 0, %s4, %s2
  // Predicated region
  $region2: #{tpu_custom_call.1} parent=0 // pred_check
    _
  $region3: #{tpu_custom_call.1} parent=0 // pred_check_branch
    %7 = sbr.rel (0) target = $region5
  $region4: #{tpu_custom_call.1} parent=0 // pred_region
    _
  $region5: #{tpu_custom_call.1} parent=0 // pred_fallthru
    _
  %v8 = vld [vmem:[%s0] sm:$0xff]
  %v9 = vld [vmem:[%s0 + $0x8] sm:$0xff]
  %v10 = vld [vmem:[%s0 + $0x10] sm:$0xff]
  %v11 = vld [vmem:[%s0 + $0x18] sm:$0xff]
  %v12 = vmul.f32 %v8, 0.5
  %v13 = vmul.f32 %v9, 0.5
  %v14 = vmul.f32 %v10, 0.5
  %v15 = vmul.f32 %v11, 0.5
  %vm16 = vcmask 130048
  %v17 = vsel %vm16, %v12, -inf
  %v18 = vsel %vm16, %v13, -inf
  %v19 = vsel %vm16, %v14, -inf
  %v20 = vsel %vm16, %v15, -inf
  %v21 = vmax.f32 %v17, %v18
  %v22 = vmax.f32 %v19, %v20
  %v23 = vmax.f32 %v21, %v22
  %v24 = vrot.slane %v23, 4
  %v25 = vmax.f32 %v23, %v24
  %v26 = vrot.slane %v25, 2
  %v27 = vmax.f32 %v25, %v26
  %v28 = vrot.slane %v27, 1
  %v29 = vmax.f32 %v27, %v28
  %v30 = vsub.f32 %v12, %v29
  %v31 = vsub.f32 %v13, %v29
  %v32 = vsub.f32 %v14, %v29
  %v33 = vsub.f32 %v15, %v29
  %v34 = vmul.f32 %v30, 1.442695
  %v35 = vpow.pop %v34
  %v36 = vmul.f32 %v31, 1.442695
  %v37 = vpow.pop %v36
  %v38 = vmul.f32 %v32, 1.442695
  %v39 = vpow.pop %v38
  %v40 = vmul.f32 %v33, 1.442695
  %v41 = vpow.pop %v40
  %v42 = vsel %vm16, %v35, 0.0
  %v43 = vsel %vm16, %v37, 0.0
  %v44 = vadd.f32 %v42, %v43
  %v45 = vsel %vm16, %v39, 0.0
  %v46 = vadd.f32 %v44, %v45
  %v47 = vsel %vm16, %v41, 0.0
  %v48 = vadd.f32 %v46, %v47
  %v49 = vrot.slane %v48, 4
  %v50 = vadd.f32 %v48, %v49
  %v51 = vrot.slane %v50, 2
  %v52 = vadd.f32 %v50, %v51
  %v53 = vrot.slane %v52, 1
  %v54 = vadd.f32 %v52, %v53
  %v55 = vrcp.pop %v54
  %v56 = vmul.f32 %v54, %v55
  %v57 = vsub.f32 1.0, %v56
  %v58 = vmul.f32 %v55, %v57
  %v59 = vadd.f32 %v55, %v58
  %vm60 = vweird.f32 %v54
  %vm61 = vweird.f32 %v55
  %vm62 = vmor %vm60, %vm61
  %v63 = vsel %vm62, %v55, %v59
  %v64 = vand.u32 2147483647, %v54
  %vm65 = vcmp.eq.f32.partialorder %v64, 8.507059e+37
  %v66 = vand.u32 %v54, 2147483648
  %v67 = vor.u32 1.1754944e-38, %v66
  %v68 = vsel %vm65, %v67, %v63
  %v69 = vmul.f32 %v35, %v68
  %v70 = vmul.f32 %v37, %v68
  %v71 = vmul.f32 %v39, %v68
  %v72 = vmul.f32 %v41, %v68
  %73 = vst.msk [vmem:[%s1] sm:$0xff] %vm16, %v69
  %74 = vst.msk [vmem:[%s1 + $0x8] sm:$0xff] %vm16, %v70
  %75 = vst.msk [vmem:[%s1 + $0x10] sm:$0xff] %vm16, %v71
  %76 = vst.msk [vmem:[%s1 + $0x18] sm:$0xff] %vm16, %v72
  // Predicated region
  $region6: #{tpu_custom_call.1} parent=0 // pred_check
    _
  $region7: #{tpu_custom_call.1} parent=0 // pred_check_branch
    %78 = sbr.rel (0) target = $region9
  $region8: #{tpu_custom_call.1} parent=0 // pred_region
    _
  $region9: #{tpu_custom_call.1} parent=0 // pred_fallthru
    _
  // Predicated region
  $region10: #{tpu_custom_call.1} parent=0 // pred_check
    _
  $region11: #{tpu_custom_call.1} parent=0 // pred_check_branch
    %80 = sbr.rel (0) target = $region13
  $region12: #{tpu_custom_call.1} parent=0 // pred_region
    _
  $region13: #{tpu_custom_call.1} parent=0 // pred_fallthru
    _

</llo_original>
